<compile_context>
chip_gen: v7x
topology: tpu7x:2x2x1
jax: 0.10.0
libtpu: 0.0.40
codegen_flags: <defaults>
</compile_context>

<pallas_src>
import jax
import jax.numpy as jnp
from jax.experimental import pallas as pl
from jax.experimental.pallas import tpu as pltpu

# ----------------------- model hyper-parameters (static) --------------------
K_HOPS = 3          # polynomial order (number of adjacency propagations)
N_NODES = 64        # number of graph nodes
N_FEAT = 32         # input feature dim
N_CLASS = 16        # output dim of the linear readout
N_IDX = 8           # number of selected output rows (len(idx))


def poly_gcn_kernel(adj_ref, x_ref, w_ref, sel_ref, theta_ref, out_ref):
    """out = ((sum_k theta_k * A^k X) @ W)[idx], fully fused in one kernel.

    adj_ref   : VMEM [N, N]      f32   dense adjacency
    x_ref     : VMEM [N, F]      f32   node features
    w_ref     : VMEM [F, C]      f32   readout weight
    sel_ref   : VMEM [n_idx, N]  f32   one-hot row-selection matrix
    theta_ref : SMEM [K+1]       f32   polynomial coefficients (scalars)
    out_ref   : VMEM [n_idx, C]  f32   selected output logits
    """
    # Commuted readout: Y = X @ W, so the Horner chain runs at width C < F.
    y = jnp.dot(x_ref[...], w_ref[...],
                preferred_element_type=jnp.float32)               # [N, C] f32

    adj_bf = adj_ref[...].astype(jnp.bfloat16)                    # [N, N]
    sel_bf = sel_ref[...].astype(jnp.bfloat16)                    # [n_idx, N]

    # Row selection as MXU matmuls (independent of the serial Horner chain).
    # One-hot rows make the bf16 selection of adj exact to bf16 rounding.
    adj_sel_bf = jnp.dot(sel_bf, adj_bf,
                         preferred_element_type=jnp.float32
                         ).astype(jnp.bfloat16)                   # [n_idx, N]
    y_sel = jnp.dot(sel_ref[...], y,
                    preferred_element_type=jnp.float32)           # [n_idx, C] f32

    # Horner's rule on Y, carried in f32 vregs; bf16 operands for each dot:
    #   b_K = theta_K * Y ;  b_k = A @ b_{k+1} + theta_k * Y   (k = K-1 .. 1)
    acc = theta_ref[K_HOPS] * y
    for k in range(K_HOPS - 1, 0, -1):
        acc = jnp.dot(adj_bf, acc.astype(jnp.bfloat16),
                      preferred_element_type=jnp.float32) + theta_ref[k] * y

    # Final hop fused with the row selection:
    #   P[idx] = A[idx] @ b_1 + theta_0 * Y[idx]
    out_ref[...] = jnp.dot(adj_sel_bf, acc.astype(jnp.bfloat16),
                           preferred_element_type=jnp.float32) \
        + theta_ref[0] * y_sel


def poly_gcn_forward(adj, x, w, theta, idx):
    """Pallas-backed forward; returns output[idx] like the PyTorch forward."""
    n, f = x.shape
    c = w.shape[1]
    n_idx = idx.shape[0]
    assert n == N_NODES and f == N_FEAT and c == N_CLASS and n_idx == N_IDX

    # One-hot selection matrix (out-of-range idx -> all-zero row, never OOB).
    sel = jax.nn.one_hot(idx, n, dtype=jnp.float32)               # [n_idx, N]

    flops = 2 * (n * f * c                       # X @ W
                 + (K_HOPS - 1) * n * n * c      # Horner hops
                 + n_idx * n * n                 # S @ A
                 + 2 * n_idx * n * c)            # S @ Y and final hop
    bytes_accessed = 4 * (n * n + n * f + f * c + n_idx * n
                          + (K_HOPS + 1) + n_idx * c)

    return pl.pallas_call(
        poly_gcn_kernel,
        out_shape=jax.ShapeDtypeStruct((n_idx, c), jnp.float32),
        in_specs=[
            pl.BlockSpec(memory_space=pltpu.MemorySpace.VMEM),    # adj
            pl.BlockSpec(memory_space=pltpu.MemorySpace.VMEM),    # x
            pl.BlockSpec(memory_space=pltpu.MemorySpace.VMEM),    # w
            pl.BlockSpec(memory_space=pltpu.MemorySpace.VMEM),    # sel (one-hot)
            pl.BlockSpec(memory_space=pltpu.MemorySpace.SMEM),    # theta (scalars)
        ],
        out_specs=pl.BlockSpec(memory_space=pltpu.MemorySpace.VMEM),
        cost_estimate=pl.CostEstimate(flops=flops, transcendentals=0,
                                      bytes_accessed=bytes_accessed),
    )(adj, x, w, sel, theta)


def reference_forward(adj, x, w, theta, idx):
    h = x
    acc = theta[0] * x
    for k in range(1, K_HOPS + 1):
        h = adj @ h
        acc = acc + theta[k] * h
    return (acc @ w)[idx]


if __name__ == "__main__":
    key = jax.random.PRNGKey(0)
    k_adj, k_x, k_w = jax.random.split(key, 3)

    # Deterministic synthetic graph: symmetric, row-normalized dense adjacency.
    raw = jax.random.uniform(k_adj, (N_NODES, N_NODES), jnp.float32)
    adj = (raw + raw.T) * 0.5
    adj = adj / jnp.sum(adj, axis=1, keepdims=True)

    x = jax.random.normal(k_x, (N_NODES, N_FEAT), jnp.float32)

    # Deterministic parameter init (shapes implied by the base poly model).
    w = jax.random.normal(k_w, (N_FEAT, N_CLASS), jnp.float32) * (1.0 / jnp.sqrt(N_FEAT))
    theta = jnp.array([1.0, 0.5, 0.25, 0.125], dtype=jnp.float32)   # [K+1]

    # idx: nodes to select (the `output[idx]` in forward)
    idx = jnp.array([0, 3, 5, 7, 11, 13, 17, 19], dtype=jnp.int32)  # [n_idx]

    out = poly_gcn_forward(adj, x, w, theta, idx)
    out = jax.block_until_ready(out)

    ref = reference_forward(adj, x, w, theta, idx)
    assert out.shape == (N_IDX, N_CLASS)
    # Tolerance relaxed vs. the pure-f32 version: propagation dots feed the MXU
    # bf16 operands (accumulation stays f32), per the performance review.
    assert jnp.allclose(out, ref, atol=5e-2, rtol=5e-2), \
        f"max abs diff {jnp.max(jnp.abs(out - ref))}"

    # TODO(synk): sparse CSR adjacency / 'bern' dual-adjacency preprocessing path
    # (scipy sparse -> torch sparse, device plumbing) has no clean dense-Pallas
    # equivalent; implemented the dense polynomial propagation.
    print("KERNEL_OK")
</pallas_src>

<mosaic_0001>
module attributes {stable_mosaic.version = 11 : i64} {
  func.func @poly_gcn_kernel(%arg0: memref<64x64xf32, #tpu.memory_space<vmem>>, %arg1: memref<64x32xf32, #tpu.memory_space<vmem>>, %arg2: memref<32x16xf32, #tpu.memory_space<vmem>>, %arg3: memref<8x64xf32, #tpu.memory_space<vmem>>, %arg4: memref<4xf32, #tpu.memory_space<smem>>, %arg5: memref<8x16xf32, #tpu.memory_space<vmem>>) attributes {dimension_semantics = [], scalar_prefetch = 0 : i64, scratch_operands = 0 : i64, tpu.core_type = #tpu.core_type<tc>} {
    %c0 = arith.constant 0 : index
    %c0_0 = arith.constant 0 : index
    %0 = vector.load %arg1[%c0, %c0_0] : memref<64x32xf32, #tpu.memory_space<vmem>>, vector<64x32xf32>
    %c0_1 = arith.constant 0 : index
    %c0_2 = arith.constant 0 : index
    %1 = vector.load %arg2[%c0_1, %c0_2] : memref<32x16xf32, #tpu.memory_space<vmem>>, vector<32x16xf32>
    %cst = arith.constant dense<0.000000e+00> : vector<64x16xf32>
    %2 = tpu.matmul %0, %1, %cst {dimension_numbers = #tpu.dot_dimension_numbers<[1], [0], [0], [1], [0, 0, 1, 1], [], []>} : vector<64x32xf32>, vector<32x16xf32>, vector<64x16xf32> -> vector<64x16xf32>
    %c0_3 = arith.constant 0 : index
    %c0_4 = arith.constant 0 : index
    %3 = vector.load %arg0[%c0_3, %c0_4] : memref<64x64xf32, #tpu.memory_space<vmem>>, vector<64x64xf32>
    %4 = arith.truncf %3 : vector<64x64xf32> to vector<64x64xbf16>
    %c0_5 = arith.constant 0 : index
    %c0_6 = arith.constant 0 : index
    %5 = vector.load %arg3[%c0_5, %c0_6] : memref<8x64xf32, #tpu.memory_space<vmem>>, vector<8x64xf32>
    %6 = arith.truncf %5 : vector<8x64xf32> to vector<8x64xbf16>
    %cst_7 = arith.constant dense<0.000000e+00> : vector<8x64xf32>
    %7 = tpu.matmul %6, %4, %cst_7 {dimension_numbers = #tpu.dot_dimension_numbers<[1], [0], [0], [1], [0, 0, 1, 1], [], []>} : vector<8x64xbf16>, vector<64x64xbf16>, vector<8x64xf32> -> vector<8x64xf32>
    %8 = arith.truncf %7 : vector<8x64xf32> to vector<8x64xbf16>
    %c0_8 = arith.constant 0 : index
    %c0_9 = arith.constant 0 : index
    %9 = vector.load %arg3[%c0_8, %c0_9] : memref<8x64xf32, #tpu.memory_space<vmem>>, vector<8x64xf32>
    %cst_10 = arith.constant dense<0.000000e+00> : vector<8x16xf32>
    %10 = tpu.matmul %9, %2, %cst_10 {dimension_numbers = #tpu.dot_dimension_numbers<[1], [0], [0], [1], [0, 0, 1, 1], [], []>} : vector<8x64xf32>, vector<64x16xf32>, vector<8x16xf32> -> vector<8x16xf32>
    %c3 = arith.constant 3 : index
    %11 = memref.load %arg4[%c3] : memref<4xf32, #tpu.memory_space<smem>>
    %12 = vector.broadcast %11 : f32 to vector<64x16xf32>
    %13 = arith.mulf %12, %2 : vector<64x16xf32>
    %14 = arith.truncf %13 : vector<64x16xf32> to vector<64x16xbf16>
    %cst_11 = arith.constant dense<0.000000e+00> : vector<64x16xf32>
    %15 = tpu.matmul %4, %14, %cst_11 {dimension_numbers = #tpu.dot_dimension_numbers<[1], [0], [0], [1], [0, 0, 1, 1], [], []>} : vector<64x64xbf16>, vector<64x16xbf16>, vector<64x16xf32> -> vector<64x16xf32>
    %c2 = arith.constant 2 : index
    %16 = memref.load %arg4[%c2] : memref<4xf32, #tpu.memory_space<smem>>
    %17 = vector.broadcast %16 : f32 to vector<64x16xf32>
    %18 = arith.mulf %17, %2 : vector<64x16xf32>
    %19 = arith.addf %15, %18 : vector<64x16xf32>
    %20 = arith.truncf %19 : vector<64x16xf32> to vector<64x16xbf16>
    %cst_12 = arith.constant dense<0.000000e+00> : vector<64x16xf32>
    %21 = tpu.matmul %4, %20, %cst_12 {dimension_numbers = #tpu.dot_dimension_numbers<[1], [0], [0], [1], [0, 0, 1, 1], [], []>} : vector<64x64xbf16>, vector<64x16xbf16>, vector<64x16xf32> -> vector<64x16xf32>
    %c1 = arith.constant 1 : index
    %22 = memref.load %arg4[%c1] : memref<4xf32, #tpu.memory_space<smem>>
    %23 = vector.broadcast %22 : f32 to vector<64x16xf32>
    %24 = arith.mulf %23, %2 : vector<64x16xf32>
    %25 = arith.addf %21, %24 : vector<64x16xf32>
    %26 = arith.truncf %25 : vector<64x16xf32> to vector<64x16xbf16>
    %cst_13 = arith.constant dense<0.000000e+00> : vector<8x16xf32>
    %27 = tpu.matmul %8, %26, %cst_13 {dimension_numbers = #tpu.dot_dimension_numbers<[1], [0], [0], [1], [0, 0, 1, 1], [], []>} : vector<8x64xbf16>, vector<64x16xbf16>, vector<8x16xf32> -> vector<8x16xf32>
    %c0_14 = arith.constant 0 : index
    %28 = memref.load %arg4[%c0_14] : memref<4xf32, #tpu.memory_space<smem>>
    %29 = vector.broadcast %28 : f32 to vector<8x16xf32>
    %30 = arith.mulf %29, %10 : vector<8x16xf32>
    %31 = arith.addf %27, %30 : vector<8x16xf32>
    %c0_15 = arith.constant 0 : index
    %c0_16 = arith.constant 0 : index
    %32 = vector.load %arg5[%c0_15, %c0_16] : memref<8x16xf32, #tpu.memory_space<vmem>>, vector<8x16xf32>
    tpu.vector_store %arg5[%c0_15, %c0_16], %31 {strides = array<i32>} : memref<8x16xf32, #tpu.memory_space<vmem>>, vector<8x16xf32>,
    return
  }
}

</mosaic_0001>

<llo_original>
// kernel: tpu_custom_call.1
$region0: #{tpu_custom_call.1}
  #allocation0 [shape = 'u32[]', space=smem, size = 0x4, offset = 0x4, fixed_abs, tag = 'smem constant byte address 0x4 - core index']
  #allocation1 [shape = 'u32[144,128]{1,0:T(1,128)}', space=vmem, size = 0x12000, scoped, tag = 'internal scratch']
  %s0 = inlined_call_operand.vmem [shape: f32[64,64], index: 0, kind: input, shape index: {}]
  %s1 = inlined_call_operand.vmem [shape: f32[64,32], index: 1, kind: input, shape index: {}]
  %s2 = inlined_call_operand.vmem [shape: f32[32,16], index: 2, kind: input, shape index: {}]
  %s3 = inlined_call_operand.vmem [shape: f32[8,64], index: 3, kind: input, shape index: {}]
  %s4 = inlined_call_operand.vmem [shape: f32[4], index: 4, kind: input, shape index: {}]
  %s5 = inlined_call_operand.hbm [shape: f32[8,16], index: 5, kind: output, shape index: {}]
  %s6 = sld [smem:[#allocation0]]
  $region34: #{tpu_custom_call.1} parent=0
    _
  %s8 = ssub.s32 1, %s6
  %s9 = scalar_select 0, %s8, %s6
  $region1: #{tpu_custom_call.1} parent=0
    #allocation2 [shape = 'u8[512]{0}', space=smem, size = 0x200, scoped, tag = 'input window, operand 4, single buffered']
    #allocation3 [shape = 's32[1]{0}', space=sflag, size = 0x4, scoped, tag = 'scoped memory for tpu_custom_call.1']
    #allocation4 [shape = 's32[1]{0}', space=sflag, size = 0x4, scoped, tag = 'scoped memory for tpu_custom_call.1']
    #allocation5 [shape = 'u8[4096]{0}', space=vmem, size = 0x1000, scoped, tag = 'output window, operand 0, single buffered']
    %10 = vsyncpa [#allocation4], 0
    %11 = vsyncpa [#allocation3], 0
    // Predicated region
    $region2: #{tpu_custom_call.1} parent=1 // pred_check
      _
    $region3: #{tpu_custom_call.1} parent=1 // pred_check_branch
      %13 = sbr.rel (0) target = $region5
    $region4: #{tpu_custom_call.1} parent=1 // pred_region
      _
    $region5: #{tpu_custom_call.1} parent=1 // pred_fallthru
      _
    // Predicated region
    $region6: #{tpu_custom_call.1} parent=1 // pred_check
      _
    $region7: #{tpu_custom_call.1} parent=1 // pred_check_branch
      %15 = sbr.rel (0) target = $region9
    $region8: #{tpu_custom_call.1} parent=1 // pred_region
      _
    $region9: #{tpu_custom_call.1} parent=1 // pred_fallthru
      _
    // Predicated region
    $region10: #{tpu_custom_call.1} parent=1 // pred_check
      _
    $region11: #{tpu_custom_call.1} parent=1 // pred_check_branch
      %17 = sbr.rel (0) target = $region13
    $region12: #{tpu_custom_call.1} parent=1 // pred_region
      _
    $region13: #{tpu_custom_call.1} parent=1 // pred_fallthru
      _
    // Predicated region
    $region14: #{tpu_custom_call.1} parent=1 // pred_check
      _
    $region15: #{tpu_custom_call.1} parent=1 // pred_check_branch
      %19 = sbr.rel (0) target = $region17
    $region16: #{tpu_custom_call.1} parent=1 // pred_region
      _
    $region17: #{tpu_custom_call.1} parent=1 // pred_fallthru
      _
    // Predicated region
    $region18: #{tpu_custom_call.1} parent=1 // pred_check
      _
    $region19: #{tpu_custom_call.1} parent=1 // pred_check_branch
      %21 = sbr.rel (0) target = $region21
    $region20: #{tpu_custom_call.1} parent=1 // pred_region
      %s23 = ssub.s32 16, 16
      %24 = vsyncadd [#allocation4], %s23
      %s26 = sshll.u32 %s4, 4
      %s27 = int_to_ptr.vmem [resolvable:$true] %s26
      %29 = dma.vmem_to_smem %s27, 16, [#allocation2], [#allocation4]
    $region21: #{tpu_custom_call.1} parent=1 // pred_fallthru
      _
    // Predicated region
    $region22: #{tpu_custom_call.1} parent=1 // pred_check
      _
    $region23: #{tpu_custom_call.1} parent=1 // pred_check_branch
      %31 = sbr.rel (0) target = $region25
    $region24: #{tpu_custom_call.1} parent=1 // pred_region
      %32 = dma.done [#allocation4], 16
    $region25: #{tpu_custom_call.1} parent=1 // pred_fallthru
      _
    %33 = sfence
    %v35 = vld [vmem:[%s1] sm:$0xff]
    %v36 = vld [vmem:[%s1 + $0x8] sm:$0xff]
    %v37 = vld [vmem:[%s1 + $0x10] sm:$0xff]
    %v38 = vld [vmem:[%s1 + $0x18] sm:$0xff]
    %v39 = vld [vmem:[%s1 + $0x20] sm:$0xff]
    %v40 = vld [vmem:[%s1 + $0x28] sm:$0xff]
    %v41 = vld [vmem:[%s1 + $0x30] sm:$0xff]
    %v42 = vld [vmem:[%s1 + $0x38] sm:$0xff]
    %v43 = vld [vmem:[%s2] sm:$0xff]
    %v44 = vld [vmem:[%s2 + $0x8] sm:$0xff]
    %v45 = vld [vmem:[%s2 + $0x10] sm:$0xff]
    %v46 = vld [vmem:[%s2 + $0x18] sm:$0xff]
    %vm47 = vcmask 261120
    %v49 = vsel %vm47, %v35, 0
    %v52 = vsel %vm47, %v36, 0
    %v55 = vsel %vm47, %v37, 0
    %v58 = vsel %vm47, %v38, 0
    %v61 = vsel %vm47, %v39, 0
    %v64 = vsel %vm47, %v40, 0
    %v67 = vsel %vm47, %v41, 0
    %v70 = vsel %vm47, %v42, 0
    %72 = vmatprep.subr.mxu0 0.0
    %73 = vmatpush1.msra.mxu0 %v43
    %74 = vmatprep.subr.mxu0 0.0
    %75 = vmatpush1.msra.mxu0 %v44
    %76 = vmatprep.subr.mxu0 0.0
    %77 = vmatpush1.msra.mxu0 %v45
    %78 = vmatprep.subr.mxu0 0.0
    %79 = vmatpush1.msra.mxu0 %v46
    %80 = vmatprep.subr.mxu0 0.0
    %81 = vmatpush1.msra.mxu0 0.0
    %82 = vmatprep.subr.mxu0 0.0
    %83 = vmatpush1.msra.mxu0 0.0
    %84 = vmatprep.subr.mxu0 0.0
    %85 = vmatpush1.msra.mxu0 0.0
    %86 = vmatprep.subr.mxu0 0.0
    %87 = vmatpush1.msra.mxu0 0.0
    %88 = vmatprep.subr.mxu0 0.0
    %89 = vmatpush1.msra.mxu0 0.0
    %90 = vmatprep.subr.mxu0 0.0
    %91 = vmatpush1.msra.mxu0 0.0
    %92 = vmatprep.subr.mxu0 0.0
    %93 = vmatpush1.msra.mxu0 0.0
    %94 = vmatprep.subr.mxu0 0.0
    %95 = vmatpush1.msra.mxu0 0.0
    %96 = vmatprep.subr.mxu0 0.0
    %97 = vmatpush1.msra.mxu0 0.0
    %98 = vmatprep.subr.mxu0 0.0
    %99 = vmatpush1.msra.mxu0 0.0
    %100 = vmatprep.subr.mxu0 0.0
    %101 = vmatpush1.msra.mxu0 0.0
    %102 = vmatprep.subr.mxu0 0.0
    %103 = vmatpush1.msra.mxu0 0.0
    %104 = vmatprep.subr.mxu0 0.0
    %105 = vmatpush1.msra.mxu0 0.0
    %106 = vmatprep.subr.mxu0 0.0
    %107 = vmatpush1.msra.mxu0 0.0
    %108 = vmatprep.subr.mxu0 0.0
    %109 = vmatpush1.msra.mxu0 0.0
    %110 = vmatprep.subr.mxu0 0.0
    %111 = vmatpush1.msra.mxu0 0.0
    %112 = vmatprep.subr.mxu0 0.0
    %113 = vmatpush1.msra.mxu0 0.0
    %114 = vmatprep.subr.mxu0 0.0
    %115 = vmatpush1.msra.mxu0 0.0
    %116 = vmatprep.subr.mxu0 0.0
    %117 = vmatpush1.msra.mxu0 0.0
    %118 = vmatprep.subr.mxu0 0.0
    %119 = vmatpush1.msra.mxu0 0.0
    %120 = vmatprep.subr.mxu0 0.0
    %121 = vmatpush1.msra.mxu0 0.0
    %122 = vmatprep.subr.mxu0 0.0
    %123 = vmatpush1.msra.mxu0 0.0
    %124 = vmatprep.subr.mxu0 0.0
    %125 = vmatpush1.msra.mxu0 0.0
    %126 = vmatprep.subr.mxu0 0.0
    %127 = vmatpush1.msra.mxu0 0.0
    %128 = vmatprep.subr.mxu0 0.0
    %129 = vmatpush1.msra.mxu0 0.0
    %130 = vmatprep.subr.mxu0 0.0
    %131 = vmatpush1.msra.mxu0 0.0
    %132 = vmatprep.subr.mxu0 0.0
    %133 = vmatpush1.msra.mxu0 0.0
    %134 = vmatprep.subr.mxu0 0.0
    %135 = vmatpush1.msra.mxu0 0.0
    %136 = vmatprep.mubr.f32.mxu0 0.0
    %137 = vmatmul.mubr.f32.gmra.mrb[0].mxu0 %v49
    %v138 = vpop.f32.mrb[0].mxu0
    %v139 = vadd.f32 0.0, %v138
    %v140 = vpop.f32.mrb[0].mxu0
    %141 = vmatprep.mubr.f32.mxu0 0.0
    %142 = vmatmul.mubr.f32.gmra.mrb[0].mxu0 %v52
    %v143 = vpop.f32.mrb[0].mxu0
    %v144 = vadd.f32 0.0, %v143
    %v145 = vpop.f32.mrb[0].mxu0
    %146 = vmatprep.mubr.f32.mxu0 0.0
    %147 = vmatmul.mubr.f32.gmra.mrb[0].mxu0 %v55
    %v148 = vpop.f32.mrb[0].mxu0
    %v149 = vadd.f32 0.0, %v148
    %v150 = vpop.f32.mrb[0].mxu0
    %151 = vmatprep.mubr.f32.mxu0 0.0
    %152 = vmatmul.mubr.f32.gmra.mrb[0].mxu0 %v58
    %v153 = vpop.f32.mrb[0].mxu0
    %v154 = vadd.f32 0.0, %v153
    %v155 = vpop.f32.mrb[0].mxu0
    %156 = vmatprep.mubr.f32.mxu0 0.0
    %157 = vmatmul.mubr.f32.gmra.mrb[0].mxu0 %v61
    %v158 = vpop.f32.mrb[0].mxu0
    %v159 = vadd.f32 0.0, %v158
    %v160 = vpop.f32.mrb[0].mxu0
    %161 = vmatprep.mubr.f32.mxu0 0.0
    %162 = vmatmul.mubr.f32.gmra.mrb[0].mxu0 %v64
    %v163 = vpop.f32.mrb[0].mxu0
    %v164 = vadd.f32 0.0, %v163
    %v165 = vpop.f32.mrb[0].mxu0
    %166 = vmatprep.mubr.f32.mxu0 0.0
    %167 = vmatmul.mubr.f32.gmra.mrb[0].mxu0 %v67
    %v168 = vpop.f32.mrb[0].mxu0
    %v169 = vadd.f32 0.0, %v168
    %v170 = vpop.f32.mrb[0].mxu0
    %171 = vmatprep.mubr.f32.mxu0 0.0
    %172 = vmatmul.mubr.f32.gmra.mrb[0].mxu0 %v70
    %v173 = vpop.f32.mrb[0].mxu0
    %v174 = vadd.f32 0.0, %v173
    %v175 = vpop.f32.mrb[0].mxu0
    %176 = vdwg.mxu0
    %v177 = vld [vmem:[%s0] sm:$0xff]
    %v178 = vld [vmem:[%s0 + $0x8] sm:$0xff]
    %v179 = vld [vmem:[%s0 + $0x10] sm:$0xff]
    %v180 = vld [vmem:[%s0 + $0x18] sm:$0xff]
    %v181 = vld [vmem:[%s0 + $0x20] sm:$0xff]
    %v182 = vld [vmem:[%s0 + $0x28] sm:$0xff]
    %v183 = vld [vmem:[%s0 + $0x30] sm:$0xff]
    %v184 = vld [vmem:[%s0 + $0x38] sm:$0xff]
    %v185 = vpack.c.bf16 %v178, %v177
    %v186 = vpack.c.bf16 %v180, %v179
    %v187 = vpack.c.bf16 %v182, %v181
    %v188 = vpack.c.bf16 %v184, %v183
    %v189 = vld [vmem:[%s3] sm:$0xff]
    %v190 = vpack.c.bf16 %v189, %v189
    %vm191 = vcmask 523264
    %v193 = vsel %vm191, %v190, 0
    %195 = vmatprep.subr.bf16.mxu0 0
    %196 = vmatpush1.bf16.msra.mxu0 %v185
    %197 = vmatprep.subr.bf16.mxu0 0
    %198 = vmatpush1.bf16.msra.mxu0 %v186
    %199 = vmatprep.subr.bf16.mxu0 0
    %200 = vmatpush1.bf16.msra.mxu0 %v187
    %201 = vmatprep.subr.bf16.mxu0 0
    %202 = vmatpush1.bf16.msra.mxu0 %v188
    %203 = vmatprep.subr.bf16.mxu0 0
    %204 = vmatpush1.bf16.msra.mxu0 0
    %205 = vmatprep.subr.bf16.mxu0 0
    %206 = vmatpush1.bf16.msra.mxu0 0
    %207 = vmatprep.subr.bf16.mxu0 0
    %208 = vmatpush1.bf16.msra.mxu0 0
    %209 = vmatprep.subr.bf16.mxu0 0
    %210 = vmatpush1.bf16.msra.mxu0 0
    %211 = vmatprep.subr.bf16.mxu0 0
    %212 = vmatpush1.bf16.msra.mxu0 0
    %213 = vmatprep.subr.bf16.mxu0 0
    %214 = vmatpush1.bf16.msra.mxu0 0
    %215 = vmatprep.subr.bf16.mxu0 0
    %216 = vmatpush1.bf16.msra.mxu0 0
    %217 = vmatprep.subr.bf16.mxu0 0
    %218 = vmatpush1.bf16.msra.mxu0 0
    %219 = vmatprep.subr.bf16.mxu0 0
    %220 = vmatpush1.bf16.msra.mxu0 0
    %221 = vmatprep.subr.bf16.mxu0 0
    %222 = vmatpush1.bf16.msra.mxu0 0
    %223 = vmatprep.subr.bf16.mxu0 0
    %224 = vmatpush1.bf16.msra.mxu0 0
    %225 = vmatprep.subr.bf16.mxu0 0
    %226 = vmatpush1.bf16.msra.mxu0 0
    %227 = vmatprep.mubr.bf16.mxu0 0
    %228 = vmatmul.mubr.bf16.gmra.mrb[0].mxu0 %v193
    %v229 = vpop.f32.mrb[0].mxu0
    %v230 = vadd.f32 0.0, %v229
    %v231 = vpop.f32.mrb[0].mxu0
    %v232 = vpop.f32.mrb[0].mxu0
    %v233 = vpop.f32.mrb[0].mxu0
    %234 = vdwg.mxu0
    %v235 = vpack.c.bf16 %v230, %v230
    %v237 = vsel %vm191, %v189, 0
    %239 = vmatprep.subr.mxu0 0.0
    %240 = vmatpush1.msra.mxu0 %v139
    %241 = vmatprep.subr.mxu0 0.0
    %242 = vmatpush1.msra.mxu0 %v144
    %243 = vmatprep.subr.mxu0 0.0
    %244 = vmatpush1.msra.mxu0 %v149
    %245 = vmatprep.subr.mxu0 0.0
    %246 = vmatpush1.msra.mxu0 %v154
    %247 = vmatprep.subr.mxu0 0.0
    %248 = vmatpush1.msra.mxu0 %v159
    %249 = vmatprep.subr.mxu0 0.0
    %250 = vmatpush1.msra.mxu0 %v164
    %251 = vmatprep.subr.mxu0 0.0
    %252 = vmatpush1.msra.mxu0 %v169
    %253 = vmatprep.subr.mxu0 0.0
    %254 = vmatpush1.msra.mxu0 %v174
    %255 = vmatprep.subr.mxu0 0.0
    %256 = vmatpush1.msra.mxu0 0.0
    %257 = vmatprep.subr.mxu0 0.0
    %258 = vmatpush1.msra.mxu0 0.0
    %259 = vmatprep.subr.mxu0 0.0
    %260 = vmatpush1.msra.mxu0 0.0
    %261 = vmatprep.subr.mxu0 0.0
    %262 = vmatpush1.msra.mxu0 0.0
    %263 = vmatprep.subr.mxu0 0.0
    %264 = vmatpush1.msra.mxu0 0.0
    %265 = vmatprep.subr.mxu0 0.0
    %266 = vmatpush1.msra.mxu0 0.0
    %267 = vmatprep.subr.mxu0 0.0
    %268 = vmatpush1.msra.mxu0 0.0
    %269 = vmatprep.subr.mxu0 0.0
    %270 = vmatpush1.msra.mxu0 0.0
    %271 = vmatprep.subr.mxu0 0.0
    %272 = vmatpush1.msra.mxu0 0.0
    %273 = vmatprep.subr.mxu0 0.0
    %274 = vmatpush1.msra.mxu0 0.0
    %275 = vmatprep.subr.mxu0 0.0
    %276 = vmatpush1.msra.mxu0 0.0
    %277 = vmatprep.subr.mxu0 0.0
    %278 = vmatpush1.msra.mxu0 0.0
    %279 = vmatprep.subr.mxu0 0.0
    %280 = vmatpush1.msra.mxu0 0.0
    %281 = vmatprep.subr.mxu0 0.0
    %282 = vmatpush1.msra.mxu0 0.0
    %283 = vmatprep.subr.mxu0 0.0
    %284 = vmatpush1.msra.mxu0 0.0
    %285 = vmatprep.subr.mxu0 0.0
    %286 = vmatpush1.msra.mxu0 0.0
    %287 = vmatprep.subr.mxu0 0.0
    %288 = vmatpush1.msra.mxu0 0.0
    %289 = vmatprep.subr.mxu0 0.0
    %290 = vmatpush1.msra.mxu0 0.0
    %291 = vmatprep.subr.mxu0 0.0
    %292 = vmatpush1.msra.mxu0 0.0
    %293 = vmatprep.subr.mxu0 0.0
    %294 = vmatpush1.msra.mxu0 0.0
    %295 = vmatprep.subr.mxu0 0.0
    %296 = vmatpush1.msra.mxu0 0.0
    %297 = vmatprep.subr.mxu0 0.0
    %298 = vmatpush1.msra.mxu0 0.0
    %299 = vmatprep.subr.mxu0 0.0
    %300 = vmatpush1.msra.mxu0 0.0
    %301 = vmatprep.subr.mxu0 0.0
    %302 = vmatpush1.msra.mxu0 0.0
    %303 = vmatprep.mubr.f32.mxu0 0.0
    %304 = vmatmul.mubr.f32.gmra.mrb[0].mxu0 %v237
    %v305 = vpop.f32.mrb[0].mxu0
    %v306 = vadd.f32 0.0, %v305
    %v307 = vpop.f32.mrb[0].mxu0
    %308 = vdwg.mxu0
    %s309 = sld [smem:[#allocation2 + $0x3]]
    %v310 = vstv %s309
    %v311 = vmul.f32 %v310, %v139
    %v312 = vmul.f32 %v310, %v144
    %v313 = vmul.f32 %v310, %v149
    %v314 = vmul.f32 %v310, %v154
    %v315 = vmul.f32 %v310, %v159
    %v316 = vmul.f32 %v310, %v164
    %v317 = vmul.f32 %v310, %v169
    %v318 = vmul.f32 %v310, %v174
    %v319 = vpack.c.bf16 %v312, %v311
    %v320 = vpack.c.bf16 %v314, %v313
    %v321 = vpack.c.bf16 %v316, %v315
    %v322 = vpack.c.bf16 %v318, %v317
    %s323 = sld [smem:[#allocation2 + $0x2]]
    %v324 = vstv %s323
    %v325 = vmul.f32 %v324, %v139
    %v326 = vmul.f32 %v324, %v144
    %v327 = vmul.f32 %v324, %v149
    %v328 = vmul.f32 %v324, %v154
    %v329 = vmul.f32 %v324, %v159
    %v330 = vmul.f32 %v324, %v164
    %v331 = vmul.f32 %v324, %v169
    %v332 = vmul.f32 %v324, %v174
    %v334 = vsel %vm191, %v185, 0
    %v337 = vsel %vm191, %v186, 0
    %v340 = vsel %vm191, %v187, 0
    %v343 = vsel %vm191, %v188, 0
    %345 = vmatprep.subr.bf16.mxu0 0
    %346 = vmatpush1.bf16.msra.mxu0 %v319
    %347 = vmatprep.subr.bf16.mxu0 0
    %348 = vmatpush1.bf16.msra.mxu0 %v320
    %349 = vmatprep.subr.bf16.mxu0 0
    %350 = vmatpush1.bf16.msra.mxu0 %v321
    %351 = vmatprep.subr.bf16.mxu0 0
    %352 = vmatpush1.bf16.msra.mxu0 %v322
    %353 = vmatprep.subr.bf16.mxu0 0
    %354 = vmatpush1.bf16.msra.mxu0 0
    %355 = vmatprep.subr.bf16.mxu0 0
    %356 = vmatpush1.bf16.msra.mxu0 0
    %357 = vmatprep.subr.bf16.mxu0 0
    %358 = vmatpush1.bf16.msra.mxu0 0
    %359 = vmatprep.subr.bf16.mxu0 0
    %360 = vmatpush1.bf16.msra.mxu0 0
    %361 = vmatprep.subr.bf16.mxu0 0
    %362 = vmatpush1.bf16.msra.mxu0 0
    %363 = vmatprep.subr.bf16.mxu0 0
    %364 = vmatpush1.bf16.msra.mxu0 0
    %365 = vmatprep.subr.bf16.mxu0 0
    %366 = vmatpush1.bf16.msra.mxu0 0
    %367 = vmatprep.subr.bf16.mxu0 0
    %368 = vmatpush1.bf16.msra.mxu0 0
    %369 = vmatprep.subr.bf16.mxu0 0
    %370 = vmatpush1.bf16.msra.mxu0 0
    %371 = vmatprep.subr.bf16.mxu0 0
    %372 = vmatpush1.bf16.msra.mxu0 0
    %373 = vmatprep.subr.bf16.mxu0 0
    %374 = vmatpush1.bf16.msra.mxu0 0
    %375 = vmatprep.subr.bf16.mxu0 0
    %376 = vmatpush1.bf16.msra.mxu0 0
    %377 = vmatprep.mubr.bf16.mxu0 0
    %378 = vmatmul.mubr.bf16.gmra.mrb[0].mxu0 %v334
    %v379 = vpop.f32.mrb[0].mxu0
    %v380 = vadd.f32 %v325, %v379
    %v381 = vpop.f32.mrb[0].mxu0
    %v382 = vpop.f32.mrb[0].mxu0
    %v383 = vadd.f32 %v326, %v382
    %v384 = vpop.f32.mrb[0].mxu0
    %385 = vmatprep.mubr.bf16.mxu0 0
    %386 = vmatmul.mubr.bf16.gmra.mrb[0].mxu0 %v337
    %v387 = vpop.f32.mrb[0].mxu0
    %v388 = vadd.f32 %v327, %v387
    %v389 = vpop.f32.mrb[0].mxu0
    %v390 = vpop.f32.mrb[0].mxu0
    %v391 = vadd.f32 %v328, %v390
    %v392 = vpop.f32.mrb[0].mxu0
    %393 = vmatprep.mubr.bf16.mxu0 0
    %394 = vmatmul.mubr.bf16.gmra.mrb[0].mxu0 %v340
    %v395 = vpop.f32.mrb[0].mxu0
    %v396 = vadd.f32 %v329, %v395
    %v397 = vpop.f32.mrb[0].mxu0
    %v398 = vpop.f32.mrb[0].mxu0
    %v399 = vadd.f32 %v330, %v398
    %v400 = vpop.f32.mrb[0].mxu0
    %401 = vmatprep.mubr.bf16.mxu0 0
    %402 = vmatmul.mubr.bf16.gmra.mrb[0].mxu0 %v343
    %v403 = vpop.f32.mrb[0].mxu0
    %v404 = vadd.f32 %v331, %v403
    %v405 = vpop.f32.mrb[0].mxu0
    %v406 = vpop.f32.mrb[0].mxu0
    %v407 = vadd.f32 %v332, %v406
    %v408 = vpop.f32.mrb[0].mxu0
    %409 = vdwg.mxu0
    %v410 = vpack.c.bf16 %v383, %v380
    %v411 = vpack.c.bf16 %v391, %v388
    %v412 = vpack.c.bf16 %v399, %v396
    %v413 = vpack.c.bf16 %v407, %v404
    %s414 = sld [smem:[#allocation2 + $0x1]]
    %v415 = vstv %s414
    %v416 = vmul.f32 %v415, %v139
    %v417 = vmul.f32 %v415, %v144
    %v418 = vmul.f32 %v415, %v149
    %v419 = vmul.f32 %v415, %v154
    %v420 = vmul.f32 %v415, %v159
    %v421 = vmul.f32 %v415, %v164
    %v422 = vmul.f32 %v415, %v169
    %v423 = vmul.f32 %v415, %v174
    %424 = vmatprep.subr.bf16.mxu0 0
    %425 = vmatpush1.bf16.msra.mxu0 %v410
    %426 = vmatprep.subr.bf16.mxu0 0
    %427 = vmatpush1.bf16.msra.mxu0 %v411
    %428 = vmatprep.subr.bf16.mxu0 0
    %429 = vmatpush1.bf16.msra.mxu0 %v412
    %430 = vmatprep.subr.bf16.mxu0 0
    %431 = vmatpush1.bf16.msra.mxu0 %v413
    %432 = vmatprep.subr.bf16.mxu0 0
    %433 = vmatpush1.bf16.msra.mxu0 0
    %434 = vmatprep.subr.bf16.mxu0 0
    %435 = vmatpush1.bf16.msra.mxu0 0
    %436 = vmatprep.subr.bf16.mxu0 0
    %437 = vmatpush1.bf16.msra.mxu0 0
    %438 = vmatprep.subr.bf16.mxu0 0
    %439 = vmatpush1.bf16.msra.mxu0 0
    %440 = vmatprep.subr.bf16.mxu0 0
    %441 = vmatpush1.bf16.msra.mxu0 0
    %442 = vmatprep.subr.bf16.mxu0 0
    %443 = vmatpush1.bf16.msra.mxu0 0
    %444 = vmatprep.subr.bf16.mxu0 0
    %445 = vmatpush1.bf16.msra.mxu0 0
    %446 = vmatprep.subr.bf16.mxu0 0
    %447 = vmatpush1.bf16.msra.mxu0 0
    %448 = vmatprep.subr.bf16.mxu0 0
    %449 = vmatpush1.bf16.msra.mxu0 0
    %450 = vmatprep.subr.bf16.mxu0 0
    %451 = vmatpush1.bf16.msra.mxu0 0
    %452 = vmatprep.subr.bf16.mxu0 0
    %453 = vmatpush1.bf16.msra.mxu0 0
    %454 = vmatprep.subr.bf16.mxu0 0
    %455 = vmatpush1.bf16.msra.mxu0 0
    %456 = vmatprep.mubr.bf16.mxu0 0
    %457 = vmatmul.mubr.bf16.gmra.mrb[0].mxu0 %v334
    %v458 = vpop.f32.mrb[0].mxu0
    %v459 = vadd.f32 %v416, %v458
    %v460 = vpop.f32.mrb[0].mxu0
    %v461 = vpop.f32.mrb[0].mxu0
    %v462 = vadd.f32 %v417, %v461
    %v463 = vpop.f32.mrb[0].mxu0
    %464 = vmatprep.mubr.bf16.mxu0 0
    %465 = vmatmul.mubr.bf16.gmra.mrb[0].mxu0 %v337
    %v466 = vpop.f32.mrb[0].mxu0
    %v467 = vadd.f32 %v418, %v466
    %v468 = vpop.f32.mrb[0].mxu0
    %v469 = vpop.f32.mrb[0].mxu0
    %v470 = vadd.f32 %v419, %v469
    %v471 = vpop.f32.mrb[0].mxu0
    %472 = vmatprep.mubr.bf16.mxu0 0
    %473 = vmatmul.mubr.bf16.gmra.mrb[0].mxu0 %v340
    %v474 = vpop.f32.mrb[0].mxu0
    %v475 = vadd.f32 %v420, %v474
    %v476 = vpop.f32.mrb[0].mxu0
    %v477 = vpop.f32.mrb[0].mxu0
    %v478 = vadd.f32 %v421, %v477
    %v479 = vpop.f32.mrb[0].mxu0
    %480 = vmatprep.mubr.bf16.mxu0 0
    %481 = vmatmul.mubr.bf16.gmra.mrb[0].mxu0 %v343
    %v482 = vpop.f32.mrb[0].mxu0
    %v483 = vadd.f32 %v422, %v482
    %v484 = vpop.f32.mrb[0].mxu0
    %v485 = vpop.f32.mrb[0].mxu0
    %v486 = vadd.f32 %v423, %v485
    %v487 = vpop.f32.mrb[0].mxu0
    %488 = vdwg.mxu0
    %v489 = vpack.c.bf16 %v462, %v459
    %v490 = vpack.c.bf16 %v470, %v467
    %v491 = vpack.c.bf16 %v478, %v475
    %v492 = vpack.c.bf16 %v486, %v483
    %s493 = sld [smem:[#allocation2]]
    %v494 = vstv %s493
    %v495 = vmul.f32 %v494, %v306
    %v497 = vsel %vm191, %v235, 0
    %499 = vmatprep.subr.bf16.mxu0 0
    %500 = vmatpush1.bf16.msra.mxu0 %v489
    %501 = vmatprep.subr.bf16.mxu0 0
    %502 = vmatpush1.bf16.msra.mxu0 %v490
    %503 = vmatprep.subr.bf16.mxu0 0
    %504 = vmatpush1.bf16.msra.mxu0 %v491
    %505 = vmatprep.subr.bf16.mxu0 0
    %506 = vmatpush1.bf16.msra.mxu0 %v492
    %507 = vmatprep.subr.bf16.mxu0 0
    %508 = vmatpush1.bf16.msra.mxu0 0
    %509 = vmatprep.subr.bf16.mxu0 0
    %510 = vmatpush1.bf16.msra.mxu0 0
    %511 = vmatprep.subr.bf16.mxu0 0
    %512 = vmatpush1.bf16.msra.mxu0 0
    %513 = vmatprep.subr.bf16.mxu0 0
    %514 = vmatpush1.bf16.msra.mxu0 0
    %515 = vmatprep.subr.bf16.mxu0 0
    %516 = vmatpush1.bf16.msra.mxu0 0
    %517 = vmatprep.subr.bf16.mxu0 0
    %518 = vmatpush1.bf16.msra.mxu0 0
    %519 = vmatprep.subr.bf16.mxu0 0
    %520 = vmatpush1.bf16.msra.mxu0 0
    %521 = vmatprep.subr.bf16.mxu0 0
    %522 = vmatpush1.bf16.msra.mxu0 0
    %523 = vmatprep.subr.bf16.mxu0 0
    %524 = vmatpush1.bf16.msra.mxu0 0
    %525 = vmatprep.subr.bf16.mxu0 0
    %526 = vmatpush1.bf16.msra.mxu0 0
    %527 = vmatprep.subr.bf16.mxu0 0
    %528 = vmatpush1.bf16.msra.mxu0 0
    %529 = vmatprep.subr.bf16.mxu0 0
    %530 = vmatpush1.bf16.msra.mxu0 0
    %531 = vmatprep.mubr.bf16.mxu0 0
    %532 = vmatmul.mubr.bf16.gmra.mrb[0].mxu0 %v497
    %v533 = vpop.f32.mrb[0].mxu0
    %v534 = vadd.f32 %v495, %v533
    %v535 = vpop.f32.mrb[0].mxu0
    %v536 = vpop.f32.mrb[0].mxu0
    %v537 = vpop.f32.mrb[0].mxu0
    %538 = vdwg.mxu0
    %vm539 = vcmask 130048
    %540 = vst.msk [vmem:[#allocation5] sm:$0xff] %vm539, %v534
    // Predicated region
    $region26: #{tpu_custom_call.1} parent=1 // pred_check
      _
    $region27: #{tpu_custom_call.1} parent=1 // pred_check_branch
      %542 = sbr.rel (0) target = $region29
    $region28: #{tpu_custom_call.1} parent=1 // pred_region
      %s544 = ssub.s32 128, 128
      %545 = vsyncadd [#allocation3], %s544
      %s547 = sshll.u32 [#allocation5], 4
      %s548 = int_to_ptr.vmem [resolvable:$true] %s547
      %550 = dma.vmem_to_hbm [thread:$0]  %s548, 128, %s5, [#allocation3]
    $region29: #{tpu_custom_call.1} parent=1 // pred_fallthru
      _
    // Predicated region
    $region30: #{tpu_custom_call.1} parent=1 // pred_check
      _
    $region31: #{tpu_custom_call.1} parent=1 // pred_check_branch
      %552 = sbr.rel (0) target = $region33
    $region32: #{tpu_custom_call.1} parent=1 // pred_region
      %553 = dma.done [#allocation3], 128
    $region33: #{tpu_custom_call.1} parent=1 // pred_fallthru
      _
    %554 = vsyncpa [#allocation3], 1
    %555 = vsyncpa [#allocation4], 1

</llo_original>
